<compile_context>
chip_gen: v7x
topology: tpu7x:2x2x1
jax: 0.10.0
libtpu: 0.0.40
codegen_flags: <defaults>
</compile_context>

<pallas_src>
import functools
import math

import jax
import jax.numpy as jnp
from jax.experimental import pallas as pl
from jax.experimental.pallas import tpu as pltpu


# --------------------------------------------------------------------------
# Generation-specific defaults (per perf review).
# --------------------------------------------------------------------------
_TILE_DEFAULTS = {
    # tm: rows per M tile, ti: intermediate slice width, vmem_budget: cap for
    # vmem_limit_bytes (leaves headroom under physical VMEM).
    "v7x": dict(tm=512, ti=512, vmem_budget=60 << 20),   # 64 MiB VMEM / TC
    "v6e": dict(tm=768, ti=512, vmem_budget=100 << 20),   # 128 MiB VMEM
    "v5p": dict(tm=768, ti=512, vmem_budget=100 << 20),
    "v5e": dict(tm=512, ti=512, vmem_budget=100 << 20),
    "unknown": dict(tm=512, ti=512, vmem_budget=64 << 20),
}


def _tpu_generation():
    try:
        kind = jax.devices()[0].device_kind.lower()
    except Exception:  # pragma: no cover - defensive
        return "unknown"
    if "v7" in kind:
        return "v7x"
    if "v6" in kind:
        return "v6e"
    if "v5e" in kind or "v5 lite" in kind or "v5lite" in kind:
        return "v5e"
    if "v5" in kind:
        return "v5p"
    return "unknown"


def _round_up(x, m):
    return ((x + m - 1) // m) * m


def _pick_tm(M, tm_max):
    """Pick an M tile: multiple of 8, <= tm_max, preferring one that divides M
    (avoids the wrapper-side pad copy of x)."""
    tm_max = max(8, min(int(tm_max), _round_up(M, 8)))
    tm_max = _round_up(tm_max, 8)
    if M % tm_max == 0:
        return tm_max
    best = None
    for cand in range(tm_max, 7, -8):
        if M % cand == 0:
            best = cand
            break
    if best is not None and 2 * best >= tm_max:
        return best
    return tm_max  # ragged remainder handled by a small pad


# --------------------------------------------------------------------------
# Kernel
# --------------------------------------------------------------------------
def _samba_mlp_kernel(x_ref, w1_ref, w2_ref, o_ref, acc_ref, *,
                      n_k, exact_sigmoid, precision):
    """One (M tile, H tile, intermediate slice) step of the fused MLP."""
    ti = w2_ref.shape[0]

    # fc1 on this intermediate slice: [tm, H] @ [H, 2*ti] -> [tm, 2*ti].
    # Native-dtype operands (bf16 MXU fast path), f32 accumulation.
    y = jnp.dot(x_ref[...], w1_ref[...],
                preferred_element_type=jnp.float32, precision=precision)
    gate = y[:, :ti]
    val = y[:, ti:]

    # swiglu in f32: gate * sigmoid(gate) * val.
    if exact_sigmoid:
        sig = jax.nn.sigmoid(gate)
    else:
        # exp + approx reciprocal both land on the EUP slot (free next to MXU).
        sig = pl.reciprocal(1.0 + jnp.exp(-gate), approx=True)
    act = (gate * sig * val).astype(w2_ref.dtype)

    # fc2 partial sum for this slice: [tm, ti] @ [ti, Hh] -> [tm, Hh] (f32).
    partial = jnp.dot(act, w2_ref[...],
                      preferred_element_type=jnp.float32, precision=precision)

    if n_k == 1:
        # Single reduction step: skip the accumulator round-trip entirely.
        o_ref[...] = partial.astype(o_ref.dtype)
    else:
        j = pl.program_id(2)

        @pl.when(j == 0)
        def _():
            acc_ref[...] = partial          # direct write — no zero-fill pass

        @pl.when(j > 0)
        def _():
            acc_ref[...] += partial

        @pl.when(j == n_k - 1)
        def _():
            o_ref[...] = acc_ref[...].astype(o_ref.dtype)


# --------------------------------------------------------------------------
# One-time weight prep (keep OUT of the per-forward path).
# --------------------------------------------------------------------------
def prepare_samba_mlp_weights(w1, w2, *, ti=None):
    """w1: [2*I, H] = fc1.weight (rows [0:I] -> gate, [I:2I] -> value, matching
    y.chunk(2, dim=-1)).  w2: [H, I] = fc2.weight.

    Returns:
      w1_packed: [n_i, H, 2*ti] — slice-major: step j reads one contiguous
                 [H, 2*ti] slab whose first ti columns are that slice's gate
                 columns and the next ti its matching value columns.
      w2_t:      [I, H]  ("x @ W" orientation).
    The slice width ti is baked into w1_packed's shape, so the forward wrapper
    re-derives it from the array (no silent ti mismatch possible).
    """
    two_i, h = w1.shape
    inter = two_i // 2
    assert 2 * inter == two_i
    assert w2.shape == (h, inter)

    if ti is None:
        ti = _TILE_DEFAULTS[_tpu_generation()]["ti"]
    ti = min(int(ti), inter)
    if inter % ti != 0:
        ti = math.gcd(inter, ti)
    n_i = inter // ti

    w1_t = jnp.transpose(w1)                               # [H, 2I]
    gate = w1_t[:, :inter].reshape(h, n_i, ti)
    val = w1_t[:, inter:].reshape(h, n_i, ti)
    w1_packed = jnp.transpose(
        jnp.concatenate([gate, val], axis=-1), (1, 0, 2))  # [n_i, H, 2*ti]
    w2_t = jnp.transpose(w2)                               # [I, H]
    return w1_packed, w2_t


# --------------------------------------------------------------------------
# Forward wrapper
# --------------------------------------------------------------------------
@functools.partial(jax.jit,
                   static_argnames=("tm", "n_h", "vmem_limit_bytes",
                                    "precision"))
def samba_mlp(x, w1_packed, w2_t, *, tm=None, n_h=None,
              vmem_limit_bytes=None, precision=None):
    """x: [..., H]; w1_packed/w2_t from prepare_samba_mlp_weights()."""
    orig_shape = x.shape
    H = orig_shape[-1]
    n_i, H1, two_ti = w1_packed.shape
    ti = two_ti // 2
    I, H2 = w2_t.shape
    assert H1 == H and H2 == H and n_i * ti == I, (w1_packed.shape, w2_t.shape)

    gen = _tpu_generation()
    defaults = _TILE_DEFAULTS[gen]

    M = 1
    for d in orig_shape[:-1]:
        M *= d
    x2d = x.reshape(M, H)

    tm = _pick_tm(M, defaults["tm"] if tm is None else tm)
    n_m = pl.cdiv(M, tm)
    M_pad = n_m * tm
    if M_pad != M:
        # Only the ragged remainder case reaches here (tm is snapped to divide
        # M whenever possible).  Padded rows are benign: sigmoid(0)*0 == 0.
        # TODO(synk): for very large ragged M, process the tail with a second
        # smaller call instead of this whole-array pad copy.
        x2d = jnp.pad(x2d, ((0, M_pad - M), (0, 0)))

    if n_h is None:
        # v7x has 2 TensorCores sharded over the "parallel" grid axes; when
        # n_m == 1 (decode-shaped M), split the output H dim so both get work.
        n_h = 2 if (gen == "v7x" and n_m < 2 and H % 256 == 0) else 1
    assert H % n_h == 0 and (H // n_h) % 128 == 0 or n_h == 1
    Hh = H // n_h

    bytes_x = jnp.dtype(x.dtype).itemsize
    bytes_w = jnp.dtype(w2_t.dtype).itemsize

    # Per-step VMEM working set (double-buffered operands + f32 accumulator +
    # margin for the [tm, 2*ti] f32 fc1 result / activation).  Only raise the
    # scoped-VMEM limit when the defaults would actually be exceeded.
    vmem_est = (2 * tm * H * bytes_x          # x tile
                + 2 * H * 2 * ti * bytes_w    # fc1 slab
                + 2 * ti * Hh * bytes_w       # fc2 slab
                + 2 * tm * Hh * bytes_x       # out tile
                + tm * Hh * 4                 # f32 accumulator scratch
                + 3 * tm * ti * 4)            # fc1 f32 result + act scratch
    if vmem_limit_bytes is None and vmem_est > (12 << 20):
        vmem_limit_bytes = int(min(defaults["vmem_budget"],
                                   vmem_est + (6 << 20)))

    cost = pl.CostEstimate(
        flops=2 * M_pad * H * 2 * I * n_h + 2 * M_pad * I * H,
        transcendentals=M_pad * I * n_h,
        bytes_accessed=(2 * M_pad * H * bytes_x
                        + n_m * n_h * H * 2 * I * bytes_w
                        + n_m * I * H * bytes_w),
    )

    exact_sigmoid = bool(x.dtype == jnp.float32)
    kernel = functools.partial(_samba_mlp_kernel, n_k=n_i,
                               exact_sigmoid=exact_sigmoid,
                               precision=precision)

    out2d = pl.pallas_call(
        kernel,
        out_shape=jax.ShapeDtypeStruct((M_pad, H), x.dtype),
        grid_spec=pltpu.PrefetchScalarGridSpec(
            num_scalar_prefetch=0,
            grid=(n_m, n_h, n_i),                       # reduction axis last
            in_specs=[
                pl.BlockSpec((tm, H), lambda i, h, j: (i, 0)),          # x
                pl.BlockSpec((None, H, 2 * ti),
                             lambda i, h, j: (j, 0, 0)),                # fc1
                pl.BlockSpec((ti, Hh), lambda i, h, j: (j, h)),         # fc2
            ],
            out_specs=pl.BlockSpec((tm, Hh), lambda i, h, j: (i, h)),
            scratch_shapes=[pltpu.VMEM((tm, Hh), jnp.float32)],         # acc
        ),
        compiler_params=pltpu.CompilerParams(
            dimension_semantics=("parallel", "parallel", "arbitrary"),
            vmem_limit_bytes=vmem_limit_bytes),
        cost_estimate=cost,
    )(x2d, w1_packed, w2_t)

    if M_pad != M:
        out2d = out2d[:M]
    return out2d.reshape(orig_shape)


# --------------------------------------------------------------------------
# Pure-JAX reference (matches the PyTorch forward, incl. act-dtype cast).
# --------------------------------------------------------------------------
def samba_mlp_ref(x, w1, w2):
    I = w1.shape[0] // 2
    y = jnp.einsum("...h,oh->...o", x, w1,
                   preferred_element_type=jnp.float32)
    gate, val = y[..., :I], y[..., I:]
    act = (gate * jax.nn.sigmoid(gate) * val).astype(x.dtype)
    out = jnp.einsum("...i,hi->...h", act, w2,
                     preferred_element_type=jnp.float32)
    return out.astype(x.dtype)


# --------------------------------------------------------------------------
# Self-test
# --------------------------------------------------------------------------
def _run_case(key, B, S, H, I, dtype, atol, rtol, *, ti=None, tm=None,
              n_h=None):
    kx, k1, k2 = jax.random.split(key, 3)
    x = jax.random.normal(kx, (B, S, H), dtype=jnp.float32).astype(dtype)
    # nn.Linear-style weights: [out_features, in_features].
    w1 = (jax.random.normal(k1, (2 * I, H), dtype=jnp.float32)
          * (1.0 / jnp.sqrt(H))).astype(dtype)
    w2 = (jax.random.normal(k2, (H, I), dtype=jnp.float32)
          * (1.0 / jnp.sqrt(I))).astype(dtype)

    w1_packed, w2_t = prepare_samba_mlp_weights(w1, w2, ti=ti)   # once
    out = samba_mlp(x, w1_packed, w2_t, tm=tm, n_h=n_h)
    out = jax.block_until_ready(out)

    ref = samba_mlp_ref(x, w1, w2)
    assert out.shape == (B, S, H)
    # Tolerances account for TPU default matmul lowering (bf16 MXU passes with
    # f32 accumulation) in both the kernel and the XLA reference; pass
    # precision=jax.lax.Precision.HIGHEST in both for tight f32 parity.
    ok = jnp.allclose(out.astype(jnp.float32), ref.astype(jnp.float32),
                      atol=atol, rtol=rtol)
    assert ok, f"mismatch vs reference (dtype={dtype}, H={H}, I={I})"


if __name__ == "__main__":
    key = jax.random.PRNGKey(0)
    k_a, k_b = jax.random.split(key)

    # Case 1: small shapes consistent with the module spec (batch=2, seq=8,
    # hidden=32, intermediate=64), f32.  Auto tile selection; n_i == 1 path
    # (no accumulator), no pad (tm snaps to M=16).
    _run_case(k_a, B=2, S=8, H=32, I=64, dtype=jnp.float32,
              atol=2e-2, rtol=2e-2)

    # Case 2: bf16, forced small tiles so the grid is (2, 2, 2) — exercises
    # the multi-M-tile path, the output-H split (2 "parallel" H tiles), and
    # the streamed-I f32 accumulator with direct write on j==0.
    _run_case(k_b, B=2, S=128, H=256, I=512, dtype=jnp.bfloat16,
              atol=2e-2, rtol=2e-2, ti=256, tm=128, n_h=2)

    # TODO(synk): backward pass (SwiGLUFunction.backward / swiglu_bwd) not
    # implemented — forward only, matching the requested module forward.
    print("KERNEL_OK")
</pallas_src>

<mosaic_0001>
module attributes {stable_mosaic.version = 11 : i64} {
  func.func @_samba_mlp_kernel(%arg0: i32, %arg1: i32, %arg2: i32, %arg3: memref<16x32xf32, #tpu.memory_space<vmem>>, %arg4: memref<1x32x128xf32, #tpu.memory_space<vmem>>, %arg5: memref<64x32xf32, #tpu.memory_space<vmem>>, %arg6: memref<16x32xf32, #tpu.memory_space<vmem>>, %arg7: memref<16x32xf32, #tpu.memory_space<vmem>>) attributes {dimension_semantics = [#tpu.dimension_semantics<parallel>, #tpu.dimension_semantics<parallel>, #tpu.dimension_semantics<arbitrary>], iteration_bounds = array<i64: 1, 1, 1>, scalar_prefetch = 0 : i64, scratch_operands = 1 : i64, tpu.core_type = #tpu.core_type<tc>, window_params = [{transform_indices = @transform_0, window_bounds = array<i64: 16, 32>}, {transform_indices = @transform_1, window_bounds = array<i64: 1, 32, 128>}, {transform_indices = @transform_2, window_bounds = array<i64: 64, 32>}, {transform_indices = @transform_3, window_bounds = array<i64: 16, 32>}]} {
    %c0 = arith.constant 0 : index
    %c0_0 = arith.constant 0 : index
    %0 = vector.load %arg3[%c0, %c0_0] : memref<16x32xf32, #tpu.memory_space<vmem>>, vector<16x32xf32>
    %c0_1 = arith.constant 0 : index
    %c0_2 = arith.constant 0 : index
    %c0_3 = arith.constant 0 : index
    %1 = vector.load %arg4[%c0_1, %c0_2, %c0_3] : memref<1x32x128xf32, #tpu.memory_space<vmem>>, vector<1x32x128xf32>
    %2 = vector.shape_cast %1 : vector<1x32x128xf32> to vector<32x128xf32>
    %cst = arith.constant dense<0.000000e+00> : vector<16x128xf32>
    %3 = tpu.matmul %0, %2, %cst {dimension_numbers = #tpu.dot_dimension_numbers<[1], [0], [0], [1], [0, 0, 1, 1], [], []>} : vector<16x32xf32>, vector<32x128xf32>, vector<16x128xf32> -> vector<16x128xf32>
    %4 = vector.extract_strided_slice %3 {offsets = [0, 0], sizes = [16, 64], strides = [1, 1]} : vector<16x128xf32> to vector<16x64xf32>
    %5 = vector.extract_strided_slice %3 {offsets = [0, 64], sizes = [16, 64], strides = [1, 1]} : vector<16x128xf32> to vector<16x64xf32>
    %6 = arith.negf %4 : vector<16x64xf32>
    %7 = math.exp %6 : vector<16x64xf32>
    %cst_4 = arith.constant 1.000000e+00 : f32
    %8 = vector.broadcast %cst_4 : f32 to vector<16x64xf32>
    %9 = arith.addf %8, %7 : vector<16x64xf32>
    %10 = arith.divf %8, %9 : vector<16x64xf32>
    %11 = arith.mulf %4, %10 : vector<16x64xf32>
    %12 = arith.mulf %11, %5 : vector<16x64xf32>
    %c0_5 = arith.constant 0 : index
    %c0_6 = arith.constant 0 : index
    %13 = vector.load %arg5[%c0_5, %c0_6] : memref<64x32xf32, #tpu.memory_space<vmem>>, vector<64x32xf32>
    %cst_7 = arith.constant dense<0.000000e+00> : vector<16x32xf32>
    %14 = tpu.matmul %12, %13, %cst_7 {dimension_numbers = #tpu.dot_dimension_numbers<[1], [0], [0], [1], [0, 0, 1, 1], [], []>} : vector<16x64xf32>, vector<64x32xf32>, vector<16x32xf32> -> vector<16x32xf32>
    %c0_8 = arith.constant 0 : index
    %c0_9 = arith.constant 0 : index
    %15 = vector.load %arg6[%c0_8, %c0_9] : memref<16x32xf32, #tpu.memory_space<vmem>>, vector<16x32xf32>
    tpu.vector_store %arg6[%c0_8, %c0_9], %14 {strides = array<i32>} : memref<16x32xf32, #tpu.memory_space<vmem>>, vector<16x32xf32>,
    return
  }
  func.func @transform_0(%arg0: i32, %arg1: i32, %arg2: i32) -> (i32, i32) {
    %c0_i32 = arith.constant 0 : i32
    %c0_i32_0 = arith.constant 0 : i32
    return %arg0, %c0_i32 : i32, i32
  }
  func.func @transform_1(%arg0: i32, %arg1: i32, %arg2: i32) -> (i32, i32, i32) {
    %c0_i32 = arith.constant 0 : i32
    %c0_i32_0 = arith.constant 0 : i32
    %c0_i32_1 = arith.constant 0 : i32
    return %arg2, %c0_i32, %c0_i32_0 : i32, i32, i32
  }
  func.func @transform_2(%arg0: i32, %arg1: i32, %arg2: i32) -> (i32, i32) {
    %c0_i32 = arith.constant 0 : i32
    return %arg2, %arg1 : i32, i32
  }
  func.func @transform_3(%arg0: i32, %arg1: i32, %arg2: i32) -> (i32, i32) {
    %c0_i32 = arith.constant 0 : i32
    return %arg0, %arg1 : i32, i32
  }
}

</mosaic_0001>

<llo_original>
// kernel: samba_mlp.1
$region0: #{samba_mlp.1}
  #allocation0 [shape = 'u32[]', space=smem, size = 0x4, offset = 0x4, fixed_abs, tag = 'smem constant byte address 0x4 - core index']
  #allocation1 [shape = 'u32[144,128]{1,0:T(1,128)}', space=vmem, size = 0x12000, scoped, tag = 'internal scratch']
  #allocation2 [shape = 'f32[16,32]{1,0:T(8,128)}', space=vmem, size = 0x2000, scoped, tag = 'scratch operand']
  %s0 = inlined_call_operand.vmem [shape: f32[16,32], index: 0, kind: input, shape index: {}]
  %s1 = inlined_call_operand.vmem [shape: f32[1,32,128], index: 1, kind: input, shape index: {}]
  %s2 = inlined_call_operand.vmem [shape: f32[64,32], index: 2, kind: input, shape index: {}]
  %s3 = inlined_call_operand.hbm [shape: f32[16,32], index: 3, kind: output, shape index: {}]
  %s4 = sld [smem:[#allocation0]]
  $region22: #{samba_mlp.1} parent=0
    _
  %s6 = ssub.s32 1, %s4
  %s7 = scalar_select 0, %s6, %s4
  $region1: #{samba_mlp.1} parent=0
    #allocation3 [shape = 'u8[8192]{0}', space=vmem, size = 0x2000, scoped, tag = 'output window, operand 0, single buffered']
    #allocation4 [shape = 's32[1]{0}', space=sflag, size = 0x4, scoped, tag = 'scoped memory for samba_mlp.1']
    %8 = vsyncpa [#allocation4], 0
    // Predicated region
    $region2: #{samba_mlp.1} parent=1 // pred_check
      _
    $region3: #{samba_mlp.1} parent=1 // pred_check_branch
      %10 = sbr.rel (0) target = $region5
    $region4: #{samba_mlp.1} parent=1 // pred_region
      _
    $region5: #{samba_mlp.1} parent=1 // pred_fallthru
      _
    // Predicated region
    $region6: #{samba_mlp.1} parent=1 // pred_check
      _
    $region7: #{samba_mlp.1} parent=1 // pred_check_branch
      %12 = sbr.rel (0) target = $region9
    $region8: #{samba_mlp.1} parent=1 // pred_region
      _
    $region9: #{samba_mlp.1} parent=1 // pred_fallthru
      _
    // Predicated region
    $region10: #{samba_mlp.1} parent=1 // pred_check
      _
    $region11: #{samba_mlp.1} parent=1 // pred_check_branch
      %14 = sbr.rel (0) target = $region13
    $region12: #{samba_mlp.1} parent=1 // pred_region
      _
    $region13: #{samba_mlp.1} parent=1 // pred_fallthru
      _
    %v15 = vld [vmem:[%s0] sm:$0xff]
    %v16 = vld [vmem:[%s0 + $0x8] sm:$0xff]
    %v17 = vld [vmem:[%s1] sm:$0xff]
    %v18 = vld [vmem:[%s1 + $0x8] sm:$0xff]
    %v19 = vld [vmem:[%s1 + $0x10] sm:$0xff]
    %v20 = vld [vmem:[%s1 + $0x18] sm:$0xff]
    %vm21 = vcmask 261120
    %v23 = vsel %vm21, %v15, 0
    %v26 = vsel %vm21, %v16, 0
    %28 = vmatprep.subr.mxu0 0.0
    %29 = vmatpush1.msra.mxu0 %v17
    %30 = vmatprep.subr.mxu0 0.0
    %31 = vmatpush1.msra.mxu0 %v18
    %32 = vmatprep.subr.mxu0 0.0
    %33 = vmatpush1.msra.mxu0 %v19
    %34 = vmatprep.subr.mxu0 0.0
    %35 = vmatpush1.msra.mxu0 %v20
    %36 = vmatprep.subr.mxu0 0.0
    %37 = vmatpush1.msra.mxu0 0.0
    %38 = vmatprep.subr.mxu0 0.0
    %39 = vmatpush1.msra.mxu0 0.0
    %40 = vmatprep.subr.mxu0 0.0
    %41 = vmatpush1.msra.mxu0 0.0
    %42 = vmatprep.subr.mxu0 0.0
    %43 = vmatpush1.msra.mxu0 0.0
    %44 = vmatprep.subr.mxu0 0.0
    %45 = vmatpush1.msra.mxu0 0.0
    %46 = vmatprep.subr.mxu0 0.0
    %47 = vmatpush1.msra.mxu0 0.0
    %48 = vmatprep.subr.mxu0 0.0
    %49 = vmatpush1.msra.mxu0 0.0
    %50 = vmatprep.subr.mxu0 0.0
    %51 = vmatpush1.msra.mxu0 0.0
    %52 = vmatprep.subr.mxu0 0.0
    %53 = vmatpush1.msra.mxu0 0.0
    %54 = vmatprep.subr.mxu0 0.0
    %55 = vmatpush1.msra.mxu0 0.0
    %56 = vmatprep.subr.mxu0 0.0
    %57 = vmatpush1.msra.mxu0 0.0
    %58 = vmatprep.subr.mxu0 0.0
    %59 = vmatpush1.msra.mxu0 0.0
    %60 = vmatprep.subr.mxu0 0.0
    %61 = vmatpush1.msra.mxu0 0.0
    %62 = vmatprep.subr.mxu0 0.0
    %63 = vmatpush1.msra.mxu0 0.0
    %64 = vmatprep.subr.mxu0 0.0
    %65 = vmatpush1.msra.mxu0 0.0
    %66 = vmatprep.subr.mxu0 0.0
    %67 = vmatpush1.msra.mxu0 0.0
    %68 = vmatprep.subr.mxu0 0.0
    %69 = vmatpush1.msra.mxu0 0.0
    %70 = vmatprep.subr.mxu0 0.0
    %71 = vmatpush1.msra.mxu0 0.0
    %72 = vmatprep.subr.mxu0 0.0
    %73 = vmatpush1.msra.mxu0 0.0
    %74 = vmatprep.subr.mxu0 0.0
    %75 = vmatpush1.msra.mxu0 0.0
    %76 = vmatprep.subr.mxu0 0.0
    %77 = vmatpush1.msra.mxu0 0.0
    %78 = vmatprep.subr.mxu0 0.0
    %79 = vmatpush1.msra.mxu0 0.0
    %80 = vmatprep.subr.mxu0 0.0
    %81 = vmatpush1.msra.mxu0 0.0
    %82 = vmatprep.subr.mxu0 0.0
    %83 = vmatpush1.msra.mxu0 0.0
    %84 = vmatprep.subr.mxu0 0.0
    %85 = vmatpush1.msra.mxu0 0.0
    %86 = vmatprep.subr.mxu0 0.0
    %87 = vmatpush1.msra.mxu0 0.0
    %88 = vmatprep.subr.mxu0 0.0
    %89 = vmatpush1.msra.mxu0 0.0
    %90 = vmatprep.subr.mxu0 0.0
    %91 = vmatpush1.msra.mxu0 0.0
    %92 = vmatprep.mubr.f32.mxu0 0.0
    %93 = vmatmul.mubr.f32.gmra.mrb[0].mxu0 %v23
    %v94 = vpop.f32.mrb[0].mxu0
    %v95 = vadd.f32 0.0, %v94
    %v96 = vpop.f32.mrb[0].mxu0
    %97 = vmatprep.mubr.f32.mxu0 0.0
    %98 = vmatmul.mubr.f32.gmra.mrb[0].mxu0 %v26
    %v99 = vpop.f32.mrb[0].mxu0
    %v100 = vadd.f32 0.0, %v99
    %v101 = vpop.f32.mrb[0].mxu0
    %102 = vdwg.mxu0
    %v103 = vxor.u32 %v95, 2147483648
    %v104 = vxor.u32 %v100, 2147483648
    %v105 = vmul.f32 %v103, 1.442695
    %v106 = vpow.pop %v105
    %v107 = vmul.f32 %v104, 1.442695
    %v108 = vpow.pop %v107
    %v109 = vadd.f32 %v106, 1.0
    %v110 = vadd.f32 %v108, 1.0
    %v111 = vrcp.pop %v109
    %v112 = vmul.f32 1.0, %v111
    %v113 = vrcp.pop %v110
    %v114 = vmul.f32 1.0, %v113
    %v115 = vmul.f32 %v95, %v112
    %v116 = vmul.f32 %v100, %v114
    %119 = vrot.lane.b32.xlu0 %v95, 64
    %v120 = vpop.permute.xlu0 %119
    %121 = vrot.lane.b32.xlu0 %v100, 64
    %v122 = vpop.permute.xlu0 %121
    %v125 = vmul.f32 %v115, %v120
    %v126 = vmul.f32 %v116, %v122
    %v127 = vld [vmem:[%s2] sm:$0xff]
    %v128 = vld [vmem:[%s2 + $0x8] sm:$0xff]
    %v129 = vld [vmem:[%s2 + $0x10] sm:$0xff]
    %v130 = vld [vmem:[%s2 + $0x18] sm:$0xff]
    %v131 = vld [vmem:[%s2 + $0x20] sm:$0xff]
    %v132 = vld [vmem:[%s2 + $0x28] sm:$0xff]
    %v133 = vld [vmem:[%s2 + $0x30] sm:$0xff]
    %v134 = vld [vmem:[%s2 + $0x38] sm:$0xff]
    %vm135 = vcmask 523264
    %v137 = vsel %vm135, %v125, 0
    %v140 = vsel %vm135, %v126, 0
    %142 = vmatprep.subr.mxu0 0.0
    %143 = vmatpush1.msra.mxu0 %v127
    %144 = vmatprep.subr.mxu0 0.0
    %145 = vmatpush1.msra.mxu0 %v128
    %146 = vmatprep.subr.mxu0 0.0
    %147 = vmatpush1.msra.mxu0 %v129
    %148 = vmatprep.subr.mxu0 0.0
    %149 = vmatpush1.msra.mxu0 %v130
    %150 = vmatprep.subr.mxu0 0.0
    %151 = vmatpush1.msra.mxu0 %v131
    %152 = vmatprep.subr.mxu0 0.0
    %153 = vmatpush1.msra.mxu0 %v132
    %154 = vmatprep.subr.mxu0 0.0
    %155 = vmatpush1.msra.mxu0 %v133
    %156 = vmatprep.subr.mxu0 0.0
    %157 = vmatpush1.msra.mxu0 %v134
    %158 = vmatprep.subr.mxu0 0.0
    %159 = vmatpush1.msra.mxu0 0.0
    %160 = vmatprep.subr.mxu0 0.0
    %161 = vmatpush1.msra.mxu0 0.0
    %162 = vmatprep.subr.mxu0 0.0
    %163 = vmatpush1.msra.mxu0 0.0
    %164 = vmatprep.subr.mxu0 0.0
    %165 = vmatpush1.msra.mxu0 0.0
    %166 = vmatprep.subr.mxu0 0.0
    %167 = vmatpush1.msra.mxu0 0.0
    %168 = vmatprep.subr.mxu0 0.0
    %169 = vmatpush1.msra.mxu0 0.0
    %170 = vmatprep.subr.mxu0 0.0
    %171 = vmatpush1.msra.mxu0 0.0
    %172 = vmatprep.subr.mxu0 0.0
    %173 = vmatpush1.msra.mxu0 0.0
    %174 = vmatprep.subr.mxu0 0.0
    %175 = vmatpush1.msra.mxu0 0.0
    %176 = vmatprep.subr.mxu0 0.0
    %177 = vmatpush1.msra.mxu0 0.0
    %178 = vmatprep.subr.mxu0 0.0
    %179 = vmatpush1.msra.mxu0 0.0
    %180 = vmatprep.subr.mxu0 0.0
    %181 = vmatpush1.msra.mxu0 0.0
    %182 = vmatprep.subr.mxu0 0.0
    %183 = vmatpush1.msra.mxu0 0.0
    %184 = vmatprep.subr.mxu0 0.0
    %185 = vmatpush1.msra.mxu0 0.0
    %186 = vmatprep.subr.mxu0 0.0
    %187 = vmatpush1.msra.mxu0 0.0
    %188 = vmatprep.subr.mxu0 0.0
    %189 = vmatpush1.msra.mxu0 0.0
    %190 = vmatprep.subr.mxu0 0.0
    %191 = vmatpush1.msra.mxu0 0.0
    %192 = vmatprep.subr.mxu0 0.0
    %193 = vmatpush1.msra.mxu0 0.0
    %194 = vmatprep.subr.mxu0 0.0
    %195 = vmatpush1.msra.mxu0 0.0
    %196 = vmatprep.subr.mxu0 0.0
    %197 = vmatpush1.msra.mxu0 0.0
    %198 = vmatprep.subr.mxu0 0.0
    %199 = vmatpush1.msra.mxu0 0.0
    %200 = vmatprep.subr.mxu0 0.0
    %201 = vmatpush1.msra.mxu0 0.0
    %202 = vmatprep.subr.mxu0 0.0
    %203 = vmatpush1.msra.mxu0 0.0
    %204 = vmatprep.subr.mxu0 0.0
    %205 = vmatpush1.msra.mxu0 0.0
    %206 = vmatprep.mubr.f32.mxu0 0.0
    %207 = vmatmul.mubr.f32.gmra.mrb[0].mxu0 %v137
    %v208 = vpop.f32.mrb[0].mxu0
    %v209 = vadd.f32 0.0, %v208
    %v210 = vpop.f32.mrb[0].mxu0
    %211 = vmatprep.mubr.f32.mxu0 0.0
    %212 = vmatmul.mubr.f32.gmra.mrb[0].mxu0 %v140
    %v213 = vpop.f32.mrb[0].mxu0
    %v214 = vadd.f32 0.0, %v213
    %v215 = vpop.f32.mrb[0].mxu0
    %216 = vdwg.mxu0
    %217 = vst.msk [vmem:[#allocation3] sm:$0xff] %vm21, %v209
    %218 = vst.msk [vmem:[#allocation3 + $0x8] sm:$0xff] %vm21, %v214
    // Predicated region
    $region14: #{samba_mlp.1} parent=1 // pred_check
      _
    $region15: #{samba_mlp.1} parent=1 // pred_check_branch
      %220 = sbr.rel (0) target = $region17
    $region16: #{samba_mlp.1} parent=1 // pred_region
      %s222 = ssub.s32 256, 256
      %223 = vsyncadd [#allocation4], %s222
      %s224 = sshll.u32 [#allocation3], 4
      %s225 = int_to_ptr.vmem [resolvable:$true] %s224
      %230 = dma.vmem_to_hbm [thread:$0]  %s225, 256, %s3, [#allocation4], 128, 128, 8
    $region17: #{samba_mlp.1} parent=1 // pred_fallthru
      _
    // Predicated region
    $region18: #{samba_mlp.1} parent=1 // pred_check
      _
    $region19: #{samba_mlp.1} parent=1 // pred_check_branch
      %232 = sbr.rel (0) target = $region21
    $region20: #{samba_mlp.1} parent=1 // pred_region
      %233 = dma.done [#allocation4], 256
    $region21: #{samba_mlp.1} parent=1 // pred_fallthru
      _
    %234 = vsyncpa [#allocation4], 1

</llo_original>
